<compile_context>
chip_gen: v5e
topology: v5e:2x2
jax: 0.10.0
libtpu: 0.0.40
codegen_flags: <defaults>
</compile_context>

<pallas_src>
import functools

import jax
import jax.numpy as jnp
from jax.experimental import pallas as pl
from jax.experimental.pallas import tpu as pltpu


def _cross_kernel(x_ref, wb_ref, qb_ref, bl_ref, o_ref, *,
                  num_layers, dp, bf16_finish):
    # x_ref/o_ref: (TM, Dp) packed rows (caller dtype).
    # wb_ref:      (Dp, L*Dp) bf16 concatenated block-diagonal matrices.
    # qb_ref:      (L, Dp)  f32, q_i broadcast over lanes.
    # bl_ref:      (1, Dp)  f32, B_L (sum of all biases) tiled over packed rows.
    xb = x_ref[...].astype(jnp.bfloat16)

    # ONE batched matmul: p_i = dot(x0_segment, w_i) for every layer i and
    # every packed logical row, already broadcast over that row's lanes.
    pq = jnp.dot(xb, wb_ref[...], preferred_element_type=jnp.float32)

    qb = qb_ref[...]                                       # (L, Dp)
    a = jnp.ones(x_ref.shape, dtype=jnp.float32)
    for i in range(num_layers):        # static unroll; pure lane-wise VPU FMAs
        p = pq[:, i * dp:(i + 1) * dp]
        a = a * (1.0 + p) + qb[i:i + 1, :]

    if bf16_finish:
        # bf16-resident finish (only taken on bf16 I/O and non-v5 chips where
        # the VPU has a bf16 ALU); halves load/store slot traffic for x0.
        out = x_ref[...] * a.astype(jnp.bfloat16) + bl_ref[...].astype(jnp.bfloat16)
    else:
        out = x_ref[...].astype(jnp.float32) * a + bl_ref[...]
    o_ref[...] = out.astype(o_ref.dtype)


def _tpu_kind():
    try:
        return jax.devices()[0].device_kind.lower()
    except Exception:
        return ""


def cross_network(x, w, b):
    """x: (B, F, D); w, b: (L, D). Returns (B, F, D) in x.dtype."""
    B, F, D = x.shape
    L = int(w.shape[0])
    M = B * F
    if L == 0:
        return x

    # --- lane-dense packing (never fall back to a lane-sparse layout) -------
    if D < 128:
        d_pad = min(128, int(pl.next_power_of_2(D)))       # divides 128
        P = 128 // d_pad
    else:
        d_pad = ((D + 127) // 128) * 128
        P = 1
    Dp = P * d_pad                                         # multiple of 128
    M_pad = ((M + P - 1) // P) * P
    Mp = M_pad // P

    xf = x.reshape(M, D)
    if M_pad != M or d_pad != D:
        xf = jnp.pad(xf, ((0, M_pad - M), (0, d_pad - D)))
    xf = xf.reshape(Mp, Dp)

    # --- host-side constants of the closed form ------------------------------
    w32 = w.astype(jnp.float32)
    b32 = b.astype(jnp.float32)
    if d_pad != D:
        w32 = jnp.pad(w32, ((0, 0), (0, d_pad - D)))
        b32 = jnp.pad(b32, ((0, 0), (0, d_pad - D)))

    b_cum = jnp.cumsum(b32, axis=0)                                   # B_{i+1}
    b_prev = jnp.concatenate(
        [jnp.zeros((1, d_pad), jnp.float32), b_cum[:-1]], axis=0)     # B_i
    q = jnp.sum(b_prev * w32, axis=-1)                                # (L,)
    qb = jnp.tile(q[:, None], (1, Dp))                                # (L, Dp)
    bl = jnp.tile(b_cum[-1][None, :], (1, P))                         # (1, Dp)

    # Block-diagonal "project + broadcast" matrices, concatenated over layers:
    # column block i of wb_all applied to a packed row yields dot(segment, w_i)
    # replicated over that segment's d_pad lanes.
    w_outer = w32[:, :, None] * jnp.ones((d_pad,), jnp.float32)       # (L,d,d)
    if P > 1:
        eye_p = jnp.eye(P, dtype=jnp.float32)
        wb = jax.vmap(lambda m: jnp.kron(eye_p, m))(w_outer)          # (L,Dp,Dp)
    else:
        wb = w_outer
    wb_all = jnp.transpose(wb, (1, 0, 2)).reshape(Dp, L * Dp)
    wb_all = wb_all.astype(jnp.bfloat16)      # single-pass bf16 MXU operands

    # --- per-generation tiling / VMEM budget ---------------------------------
    kind = _tpu_kind()
    is_v5 = "v5" in kind
    if ("v7" in kind) or ("tpu7" in kind):
        vmem_limit = 32 * 1024 * 1024          # v7x: 64 MiB physical VMEM/TC
        work_budget = 26 * 1024 * 1024
    elif is_v5 or ("v6" in kind):
        vmem_limit = 96 * 1024 * 1024          # 128 MiB physical VMEM
        work_budget = 80 * 1024 * 1024
    else:
        vmem_limit = 32 * 1024 * 1024          # unknown -> v7x-safe defaults
        work_budget = 26 * 1024 * 1024

    # Working set per grid step ~ (2 in + 2 out buffers) + f32 temporaries
    # (x0, A, L matmul column blocks, ...)  ~ (L + 7) * tile_f32_bytes.
    per_row_bytes = Dp * 4 * (L + 7)
    rows_cap = max(8, (work_budget // per_row_bytes) // 8 * 8)
    tm = Mp if Mp <= rows_cap else rows_cap
    grid = (pl.cdiv(Mp, tm),)

    bf16_finish = (x.dtype == jnp.bfloat16) and not is_v5  # no bf16 VALU on v5

    out = pl.pallas_call(
        functools.partial(_cross_kernel, num_layers=L, dp=Dp,
                          bf16_finish=bf16_finish),
        out_shape=jax.ShapeDtypeStruct((Mp, Dp), x.dtype),
        grid=grid,
        in_specs=[
            # Row tiles stream through the auto double-buffered pipeline.
            pl.BlockSpec((tm, Dp), lambda i: (i, 0)),
            # Tiny constants; constant index_map keeps them resident.
            pl.BlockSpec((Dp, L * Dp), lambda i: (0, 0)),
            pl.BlockSpec((L, Dp), lambda i: (0, 0)),
            pl.BlockSpec((1, Dp), lambda i: (0, 0)),
        ],
        out_specs=pl.BlockSpec((tm, Dp), lambda i: (i, 0)),
        compiler_params=pltpu.CompilerParams(
            # Row tiles are fully independent.  On v7x, switching this axis to
            # pltpu.CORE_PARALLEL (pre-splitting the grid across the 2 TCs) is
            # the next knob; "parallel" is kept here for portability.
            dimension_semantics=("parallel",),
            vmem_limit_bytes=vmem_limit,
        ),
    )(xf, wb_all, qb, bl)

    out = out.reshape(M_pad, d_pad)[:M, :D]
    return out.reshape(B, F, D)


def cross_network_ref(x, w, b):
    """Pure-JAX reference mirroring the PyTorch forward (layer-by-layer)."""
    x0 = x
    out = x
    for i in range(w.shape[0]):
        xw = jnp.sum(out * w[i][None, None, :], axis=-1, keepdims=True)
        out = x0 * xw + b[i][None, None, :] + out
    return out


if __name__ == "__main__":
    # Shapes consistent with (batch_size, num_fields, embed_dim).
    batch, num_fields, input_dim = 2, 8, 32
    num_layers = 3

    key = jax.random.PRNGKey(0)
    kx, kw = jax.random.split(key)

    x = jax.random.normal(kx, (batch, num_fields, input_dim), dtype=jnp.float32)
    bound = 1.0 / (input_dim ** 0.5)
    w = jax.random.uniform(kw, (num_layers, input_dim),
                           minval=-bound, maxval=bound, dtype=jnp.float32)
    b = jnp.zeros((num_layers, input_dim), dtype=jnp.float32)

    # Tolerances are loosened vs. f32: the MXU path intentionally uses
    # single-pass bf16 operands with f32 accumulation.
    TOL = dict(atol=5e-2, rtol=5e-2)

    # 1) Packed lane-dense path: D=32 -> 4 logical rows per 128-lane row.
    out = jax.block_until_ready(cross_network(x, w, b))
    ref = cross_network_ref(x, w, b)
    assert out.shape == (batch, num_fields, input_dim)
    assert jnp.allclose(out, ref, **TOL)

    # 2) D=128 (P=1, no padding) with non-zero biases.
    x2 = jax.random.normal(kx, (2, 8, 128), dtype=jnp.float32)
    w2 = jax.random.uniform(kw, (2, 128), minval=-1.0 / (128 ** 0.5),
                            maxval=1.0 / (128 ** 0.5), dtype=jnp.float32)
    b2 = 0.1 * jax.random.normal(jax.random.PRNGKey(1), (2, 128),
                                 dtype=jnp.float32)
    out2 = jax.block_until_ready(cross_network(x2, w2, b2))
    ref2 = cross_network_ref(x2, w2, b2)
    assert jnp.allclose(out2, ref2, **TOL)

    # 3) bf16 HBM I/O (matmul in bf16, f32 accumulation inside the kernel).
    xb = x.astype(jnp.bfloat16)
    outb = jax.block_until_ready(cross_network(xb, w, b))
    refb = cross_network_ref(xb.astype(jnp.float32), w, b)
    assert outb.dtype == jnp.bfloat16
    assert jnp.allclose(outb.astype(jnp.float32), refb, atol=1e-1, rtol=5e-2)

    # 4) Awkward shapes exercising row + lane padding: D=24 -> pad to 32,
    #    M=15 -> pad to 16 (still lane-dense, padding sliced off afterwards).
    x4 = jax.random.normal(jax.random.PRNGKey(2), (3, 5, 24), dtype=jnp.float32)
    w4 = jax.random.uniform(jax.random.PRNGKey(3), (3, 24),
                            minval=-1.0 / (24 ** 0.5), maxval=1.0 / (24 ** 0.5),
                            dtype=jnp.float32)
    b4 = 0.1 * jax.random.normal(jax.random.PRNGKey(4), (3, 24),
                                 dtype=jnp.float32)
    out4 = jax.block_until_ready(cross_network(x4, w4, b4))
    ref4 = cross_network_ref(x4, w4, b4)
    assert out4.shape == (3, 5, 24)
    assert jnp.allclose(out4, ref4, **TOL)

    print("KERNEL_OK")
</pallas_src>

<mosaic_0001>
module attributes {stable_mosaic.version = 11 : i64} {
  func.func @_cross_kernel(%arg0: i32, %arg1: memref<4x128xf32, #tpu.memory_space<vmem>>, %arg2: memref<128x384xbf16, #tpu.memory_space<vmem>>, %arg3: memref<3x128xf32, #tpu.memory_space<vmem>>, %arg4: memref<1x128xf32, #tpu.memory_space<vmem>>, %arg5: memref<4x128xf32, #tpu.memory_space<vmem>>) attributes {dimension_semantics = [#tpu.dimension_semantics<parallel>], iteration_bounds = array<i64: 1>, scalar_prefetch = 0 : i64, scratch_operands = 0 : i64, tpu.core_type = #tpu.core_type<tc>, window_params = [{transform_indices = @transform_0, window_bounds = array<i64: 4, 128>}, {pipeline_mode = #tpu.pipeline_mode<synchronous>, transform_indices = @transform_1, window_bounds = array<i64: 128, 384>}, {pipeline_mode = #tpu.pipeline_mode<synchronous>, transform_indices = @transform_2, window_bounds = array<i64: 3, 128>}, {pipeline_mode = #tpu.pipeline_mode<synchronous>, transform_indices = @transform_3, window_bounds = array<i64: 1, 128>}, {transform_indices = @transform_4, window_bounds = array<i64: 4, 128>}]} {
    %c0 = arith.constant 0 : index
    %c0_0 = arith.constant 0 : index
    %0 = vector.load %arg1[%c0, %c0_0] : memref<4x128xf32, #tpu.memory_space<vmem>>, vector<4x128xf32>
    %1 = arith.truncf %0 : vector<4x128xf32> to vector<4x128xbf16>
    %c0_1 = arith.constant 0 : index
    %c0_2 = arith.constant 0 : index
    %2 = vector.load %arg2[%c0_1, %c0_2] : memref<128x384xbf16, #tpu.memory_space<vmem>>, vector<128x384xbf16>
    %cst = arith.constant dense<0.000000e+00> : vector<4x384xf32>
    %3 = tpu.matmul %1, %2, %cst {dimension_numbers = #tpu.dot_dimension_numbers<[1], [0], [0], [1], [0, 0, 1, 1], [], []>} : vector<4x128xbf16>, vector<128x384xbf16>, vector<4x384xf32> -> vector<4x384xf32>
    %c0_3 = arith.constant 0 : index
    %c0_4 = arith.constant 0 : index
    %4 = vector.load %arg3[%c0_3, %c0_4] : memref<3x128xf32, #tpu.memory_space<vmem>>, vector<3x128xf32>
    %cst_5 = arith.constant 1.000000e+00 : f32
    %5 = vector.broadcast %cst_5 : f32 to vector<4x128xf32>
    %6 = vector.extract_strided_slice %3 {offsets = [0, 0], sizes = [4, 128], strides = [1, 1]} : vector<4x384xf32> to vector<4x128xf32>
    %cst_6 = arith.constant 1.000000e+00 : f32
    %7 = vector.broadcast %cst_6 : f32 to vector<4x128xf32>
    %8 = arith.addf %7, %6 : vector<4x128xf32>
    %9 = arith.mulf %5, %8 : vector<4x128xf32>
    %10 = vector.extract_strided_slice %4 {offsets = [0, 0], sizes = [1, 128], strides = [1, 1]} : vector<3x128xf32> to vector<1x128xf32>
    %11 = vector.broadcast %10 : vector<1x128xf32> to vector<4x128xf32>
    %12 = arith.addf %9, %11 : vector<4x128xf32>
    %13 = vector.extract_strided_slice %3 {offsets = [0, 128], sizes = [4, 128], strides = [1, 1]} : vector<4x384xf32> to vector<4x128xf32>
    %cst_7 = arith.constant 1.000000e+00 : f32
    %14 = vector.broadcast %cst_7 : f32 to vector<4x128xf32>
    %15 = arith.addf %14, %13 : vector<4x128xf32>
    %16 = arith.mulf %12, %15 : vector<4x128xf32>
    %17 = vector.extract_strided_slice %4 {offsets = [1, 0], sizes = [1, 128], strides = [1, 1]} : vector<3x128xf32> to vector<1x128xf32>
    %18 = vector.broadcast %17 : vector<1x128xf32> to vector<4x128xf32>
    %19 = arith.addf %16, %18 : vector<4x128xf32>
    %20 = vector.extract_strided_slice %3 {offsets = [0, 256], sizes = [4, 128], strides = [1, 1]} : vector<4x384xf32> to vector<4x128xf32>
    %cst_8 = arith.constant 1.000000e+00 : f32
    %21 = vector.broadcast %cst_8 : f32 to vector<4x128xf32>
    %22 = arith.addf %21, %20 : vector<4x128xf32>
    %23 = arith.mulf %19, %22 : vector<4x128xf32>
    %24 = vector.extract_strided_slice %4 {offsets = [2, 0], sizes = [1, 128], strides = [1, 1]} : vector<3x128xf32> to vector<1x128xf32>
    %25 = vector.broadcast %24 : vector<1x128xf32> to vector<4x128xf32>
    %26 = arith.addf %23, %25 : vector<4x128xf32>
    %c0_9 = arith.constant 0 : index
    %c0_10 = arith.constant 0 : index
    %27 = vector.load %arg1[%c0_9, %c0_10] : memref<4x128xf32, #tpu.memory_space<vmem>>, vector<4x128xf32>
    %28 = arith.mulf %27, %26 : vector<4x128xf32>
    %c0_11 = arith.constant 0 : index
    %c0_12 = arith.constant 0 : index
    %29 = vector.load %arg4[%c0_11, %c0_12] : memref<1x128xf32, #tpu.memory_space<vmem>>, vector<1x128xf32>
    %30 = vector.broadcast %29 : vector<1x128xf32> to vector<4x128xf32>
    %31 = arith.addf %28, %30 : vector<4x128xf32>
    %c0_13 = arith.constant 0 : index
    %c0_14 = arith.constant 0 : index
    %32 = vector.load %arg5[%c0_13, %c0_14] : memref<4x128xf32, #tpu.memory_space<vmem>>, vector<4x128xf32>
    tpu.vector_store %arg5[%c0_13, %c0_14], %31 {strides = array<i32>} : memref<4x128xf32, #tpu.memory_space<vmem>>, vector<4x128xf32>,
    return
  }
  func.func @transform_0(%arg0: i32) -> (i32, i32) {
    %c0_i32 = arith.constant 0 : i32
    %c0_i32_0 = arith.constant 0 : i32
    return %arg0, %c0_i32 : i32, i32
  }
  func.func @transform_1(%arg0: i32) -> (i32, i32) {
    %c0_i32 = arith.constant 0 : i32
    %c0_i32_0 = arith.constant 0 : i32
    %c0_i32_1 = arith.constant 0 : i32
    return %c0_i32, %c0_i32_0 : i32, i32
  }
  func.func @transform_2(%arg0: i32) -> (i32, i32) {
    %c0_i32 = arith.constant 0 : i32
    %c0_i32_0 = arith.constant 0 : i32
    %c0_i32_1 = arith.constant 0 : i32
    return %c0_i32, %c0_i32_0 : i32, i32
  }
  func.func @transform_3(%arg0: i32) -> (i32, i32) {
    %c0_i32 = arith.constant 0 : i32
    %c0_i32_0 = arith.constant 0 : i32
    %c0_i32_1 = arith.constant 0 : i32
    return %c0_i32, %c0_i32_0 : i32, i32
  }
  func.func @transform_4(%arg0: i32) -> (i32, i32) {
    %c0_i32 = arith.constant 0 : i32
    %c0_i32_0 = arith.constant 0 : i32
    return %arg0, %c0_i32 : i32, i32
  }
}

</mosaic_0001>

<llo_original>
// kernel: tpu_custom_call.1
$region0: #{tpu_custom_call.1}
  #allocation0 [shape = 'u32[]', space=smem, size = 0x4, offset = 0x4, fixed_abs, tag = 'smem constant byte address 0x4 - core index']
  #allocation1 [shape = 'u32[72,128]{1,0:T(1,128)}', space=vmem, size = 0x9000, scoped, tag = 'internal scratch']
  %s0 = inlined_call_operand.hbm [shape: f32[4,128], index: 0, kind: input, shape index: {}]
  %s1 = inlined_call_operand.hbm [shape: bf16[128,384], index: 1, kind: input, shape index: {}]
  %s2 = inlined_call_operand.hbm [shape: f32[3,128], index: 2, kind: input, shape index: {}]
  %s3 = inlined_call_operand.vmem [shape: f32[1,128], index: 3, kind: input, shape index: {}]
  %s4 = inlined_call_operand.hbm [shape: f32[4,128], index: 4, kind: output, shape index: {}]
  %s5 = sld [smem:[#allocation0]]
  $region38: #{tpu_custom_call.1} parent=0
    _
  %s7 = ssub.s32 1, %s5
  %s8 = scalar_select 0, %s7, %s5
  $region1: #{tpu_custom_call.1} parent=0
    #allocation2 [shape = 'u8[2048]{0}', space=vmem, size = 0x800, scoped, tag = 'input window, operand 0, single buffered']
    #allocation3 [shape = 's32[1]{0}', space=sflag, size = 0x4, scoped, tag = 'scoped memory for tpu_custom_call.1']
    #allocation4 [shape = 's32[1]{0}', space=sflag, size = 0x4, scoped, tag = 'scoped memory for tpu_custom_call.1']
    #allocation5 [shape = 'u8[98304]{0}', space=vmem, size = 0x18000, scoped, tag = 'input window, operand 1, single buffered']
    #allocation6 [shape = 's32[1]{0}', space=sflag, size = 0x4, scoped, tag = 'scoped memory for tpu_custom_call.1']
    #allocation7 [shape = 'u8[2048]{0}', space=vmem, size = 0x800, scoped, tag = 'input window, operand 2, single buffered']
    #allocation8 [shape = 'u8[2048]{0}', space=vmem, size = 0x800, scoped, tag = 'output window, operand 0, single buffered']
    %9 = vsyncpa [#allocation3], 0
    %10 = vsyncpa [#allocation6], 0
    %11 = vsyncpa [#allocation4], 0
    // Predicated region
    $region2: #{tpu_custom_call.1} parent=1 // pred_check
      _
    $region3: #{tpu_custom_call.1} parent=1 // pred_check_branch
      %13 = sbr.rel (0) target = $region5
    $region4: #{tpu_custom_call.1} parent=1 // pred_region
      %15 = vsyncadd [#allocation3], 0
      %s17 = sshll.u32 %s0, 4
      %s18 = int_to_ptr.hbm [resolvable:$true] %s17
      %s19 = sshll.u32 [#allocation2], 4
      %s20 = int_to_ptr.vmem [resolvable:$true] %s19
      %22 = dma.hbm_to_vmem [thread:$0]  %s18, 64, %s20, [#allocation3]
    $region5: #{tpu_custom_call.1} parent=1 // pred_fallthru
      _
    // Predicated region
    $region6: #{tpu_custom_call.1} parent=1 // pred_check
      _
    $region7: #{tpu_custom_call.1} parent=1 // pred_check_branch
      %24 = sbr.rel (0) target = $region9
    $region8: #{tpu_custom_call.1} parent=1 // pred_region
      %26 = vsyncadd [#allocation6], 0
      %s27 = sshll.u32 %s1, 4
      %s28 = int_to_ptr.hbm [resolvable:$true] %s27
      %s29 = sshll.u32 [#allocation5], 4
      %s30 = int_to_ptr.vmem [resolvable:$true] %s29
      %35 = dma.hbm_to_vmem [thread:$0]  %s28, 3072, %s30, [#allocation6], 192, 192, 12
    $region9: #{tpu_custom_call.1} parent=1 // pred_fallthru
      _
    // Predicated region
    $region10: #{tpu_custom_call.1} parent=1 // pred_check
      _
    $region11: #{tpu_custom_call.1} parent=1 // pred_check_branch
      %37 = sbr.rel (0) target = $region13
    $region12: #{tpu_custom_call.1} parent=1 // pred_region
      %39 = vsyncadd [#allocation6], 0
      %s41 = sshll.u32 %s2, 4
      %s42 = int_to_ptr.hbm [resolvable:$true] %s41
      %s43 = sshll.u32 [#allocation7], 4
      %s44 = int_to_ptr.vmem [resolvable:$true] %s43
      %46 = dma.hbm_to_vmem [thread:$0]  %s42, 64, %s44, [#allocation6]
    $region13: #{tpu_custom_call.1} parent=1 // pred_fallthru
      _
    // Predicated region
    $region14: #{tpu_custom_call.1} parent=1 // pred_check
      _
    $region15: #{tpu_custom_call.1} parent=1 // pred_check_branch
      %48 = sbr.rel (0) target = $region17
    $region16: #{tpu_custom_call.1} parent=1 // pred_region
      _
    $region17: #{tpu_custom_call.1} parent=1 // pred_fallthru
      _
    // Predicated region
    $region18: #{tpu_custom_call.1} parent=1 // pred_check
      _
    $region19: #{tpu_custom_call.1} parent=1 // pred_check_branch
      %50 = sbr.rel (0) target = $region21
    $region20: #{tpu_custom_call.1} parent=1 // pred_region
      %52 = dma.done [#allocation3], 64
    $region21: #{tpu_custom_call.1} parent=1 // pred_fallthru
      _
    // Predicated region
    $region22: #{tpu_custom_call.1} parent=1 // pred_check
      _
    $region23: #{tpu_custom_call.1} parent=1 // pred_check_branch
      %54 = sbr.rel (0) target = $region25
    $region24: #{tpu_custom_call.1} parent=1 // pred_region
      %56 = dma.done [#allocation6], 3072
    $region25: #{tpu_custom_call.1} parent=1 // pred_fallthru
      _
    // Predicated region
    $region26: #{tpu_custom_call.1} parent=1 // pred_check
      _
    $region27: #{tpu_custom_call.1} parent=1 // pred_check_branch
      %58 = sbr.rel (0) target = $region29
    $region28: #{tpu_custom_call.1} parent=1 // pred_region
      %60 = dma.done [#allocation6], 64
    $region29: #{tpu_custom_call.1} parent=1 // pred_fallthru
      _
    %v61 = vld [vmem:[#allocation2] sm:$0xf]
    %v62 = vpack.c.bf16 %v61, %v61
    %v63 = vld [vmem:[#allocation5] sm:$0xff]
    %v64 = vld [vmem:[#allocation5 + $0x8] sm:$0xf]
    %v65 = vld [vmem:[#allocation5 + $0xc] sm:$0xff]
    %v66 = vld [vmem:[#allocation5 + $0x14] sm:$0xf]
    %v67 = vld [vmem:[#allocation5 + $0x18] sm:$0xff]
    %v68 = vld [vmem:[#allocation5 + $0x20] sm:$0xf]
    %v69 = vld [vmem:[#allocation5 + $0x24] sm:$0xff]
    %v70 = vld [vmem:[#allocation5 + $0x2c] sm:$0xf]
    %v71 = vld [vmem:[#allocation5 + $0x30] sm:$0xff]
    %v72 = vld [vmem:[#allocation5 + $0x38] sm:$0xf]
    %v73 = vld [vmem:[#allocation5 + $0x3c] sm:$0xff]
    %v74 = vld [vmem:[#allocation5 + $0x44] sm:$0xf]
    %v75 = vld [vmem:[#allocation5 + $0x48] sm:$0xff]
    %v76 = vld [vmem:[#allocation5 + $0x50] sm:$0xf]
    %v77 = vld [vmem:[#allocation5 + $0x54] sm:$0xff]
    %v78 = vld [vmem:[#allocation5 + $0x5c] sm:$0xf]
    %v79 = vld [vmem:[#allocation5 + $0x60] sm:$0xff]
    %v80 = vld [vmem:[#allocation5 + $0x68] sm:$0xf]
    %v81 = vld [vmem:[#allocation5 + $0x6c] sm:$0xff]
    %v82 = vld [vmem:[#allocation5 + $0x74] sm:$0xf]
    %v83 = vld [vmem:[#allocation5 + $0x78] sm:$0xff]
    %v84 = vld [vmem:[#allocation5 + $0x80] sm:$0xf]
    %v85 = vld [vmem:[#allocation5 + $0x84] sm:$0xff]
    %v86 = vld [vmem:[#allocation5 + $0x8c] sm:$0xf]
    %v87 = vld [vmem:[#allocation5 + $0x90] sm:$0xff]
    %v88 = vld [vmem:[#allocation5 + $0x98] sm:$0xf]
    %v89 = vld [vmem:[#allocation5 + $0x9c] sm:$0xff]
    %v90 = vld [vmem:[#allocation5 + $0xa4] sm:$0xf]
    %v91 = vld [vmem:[#allocation5 + $0xa8] sm:$0xff]
    %v92 = vld [vmem:[#allocation5 + $0xb0] sm:$0xf]
    %v93 = vld [vmem:[#allocation5 + $0xb4] sm:$0xff]
    %v94 = vld [vmem:[#allocation5 + $0xbc] sm:$0xf]
    %v127 = vunpack.c.l.b16 %v63
    %v128 = vunpack.c.h.b16 %v63
    %v129 = vunpack.c.l.b16 %v64
    %v130 = vunpack.c.l.b16 %v65
    %v131 = vunpack.c.h.b16 %v65
    %v132 = vunpack.c.l.b16 %v66
    %v133 = vunpack.c.l.b16 %v67
    %v134 = vunpack.c.h.b16 %v67
    %v135 = vunpack.c.l.b16 %v68
    %v136 = vunpack.c.l.b16 %v69
    %v137 = vunpack.c.h.b16 %v69
    %v138 = vunpack.c.l.b16 %v70
    %v139 = vunpack.c.l.b16 %v71
    %v140 = vunpack.c.h.b16 %v71
    %v141 = vunpack.c.l.b16 %v72
    %v142 = vunpack.c.l.b16 %v73
    %v143 = vunpack.c.h.b16 %v73
    %v144 = vunpack.c.l.b16 %v74
    %v145 = vunpack.c.l.b16 %v75
    %v146 = vunpack.c.h.b16 %v75
    %v147 = vunpack.c.l.b16 %v76
    %v148 = vunpack.c.l.b16 %v77
    %v149 = vunpack.c.h.b16 %v77
    %v150 = vunpack.c.l.b16 %v78
    %v151 = vunpack.c.l.b16 %v79
    %v152 = vunpack.c.h.b16 %v79
    %v153 = vunpack.c.l.b16 %v80
    %v154 = vunpack.c.l.b16 %v81
    %v155 = vunpack.c.h.b16 %v81
    %v156 = vunpack.c.l.b16 %v82
    %v157 = vunpack.c.l.b16 %v83
    %v158 = vunpack.c.h.b16 %v83
    %v159 = vunpack.c.l.b16 %v84
    %v160 = vunpack.c.l.b16 %v85
    %v161 = vunpack.c.h.b16 %v85
    %v162 = vunpack.c.l.b16 %v86
    %v163 = vunpack.c.l.b16 %v87
    %v164 = vunpack.c.h.b16 %v87
    %v165 = vunpack.c.l.b16 %v88
    %v166 = vunpack.c.l.b16 %v89
    %v167 = vunpack.c.h.b16 %v89
    %v168 = vunpack.c.l.b16 %v90
    %v169 = vunpack.c.l.b16 %v91
    %v170 = vunpack.c.h.b16 %v91
    %v171 = vunpack.c.l.b16 %v92
    %v172 = vunpack.c.l.b16 %v93
    %v173 = vunpack.c.h.b16 %v93
    %v174 = vunpack.c.l.b16 %v94
    %v175 = vpack.c.b16 %v130, %v127
    %v176 = vpack.c.b16 %v131, %v128
    %v177 = vpack.c.b16 %v132, %v129
    %v178 = vpack.c.b16 %v136, %v133
    %v179 = vpack.c.b16 %v137, %v134
    %v180 = vpack.c.b16 %v138, %v135
    %v181 = vpack.c.b16 %v142, %v139
    %v182 = vpack.c.b16 %v143, %v140
    %v183 = vpack.c.b16 %v144, %v141
    %v184 = vpack.c.b16 %v148, %v145
    %v185 = vpack.c.b16 %v149, %v146
    %v186 = vpack.c.b16 %v150, %v147
    %v187 = vpack.c.b16 %v154, %v151
    %v188 = vpack.c.b16 %v155, %v152
    %v189 = vpack.c.b16 %v156, %v153
    %v190 = vpack.c.b16 %v160, %v157
    %v191 = vpack.c.b16 %v161, %v158
    %v192 = vpack.c.b16 %v162, %v159
    %v193 = vpack.c.b16 %v166, %v163
    %v194 = vpack.c.b16 %v167, %v164
    %v195 = vpack.c.b16 %v168, %v165
    %v196 = vpack.c.b16 %v172, %v169
    %v197 = vpack.c.b16 %v173, %v170
    %v198 = vpack.c.b16 %v174, %v171
    %223 = vmatpush.bf16.msra.mxu0 %v196
    %224 = vmatpush.bf16.msra.mxu0 %v193
    %225 = vmatpush.bf16.msra.mxu0 %v190
    %226 = vmatpush.bf16.msra.mxu0 %v187
    %227 = vmatpush.bf16.msra.mxu0 %v184
    %228 = vmatpush.bf16.msra.mxu0 %v181
    %229 = vmatpush.bf16.msra.mxu0 %v178
    %230 = vmatpush.bf16.msra.mxu0 %v175
    %231 = vmatmul.bf16.gmra.mxu0 %v62
    %v232 = vpop.f32.mrf.mxu0
    %v233 = vadd.f32 0.0, %v232
    %v234 = vpop.f32.mrf.mxu0
    %235 = vdwg.mxu0
    %236 = vmatpush.bf16.msra.mxu0 %v197
    %237 = vmatpush.bf16.msra.mxu0 %v194
    %238 = vmatpush.bf16.msra.mxu0 %v191
    %239 = vmatpush.bf16.msra.mxu0 %v188
    %240 = vmatpush.bf16.msra.mxu0 %v185
    %241 = vmatpush.bf16.msra.mxu0 %v182
    %242 = vmatpush.bf16.msra.mxu0 %v179
    %243 = vmatpush.bf16.msra.mxu0 %v176
    %244 = vmatmul.bf16.gmra.mxu0 %v62
    %v245 = vpop.f32.mrf.mxu0
    %v246 = vadd.f32 0.0, %v245
    %v247 = vpop.f32.mrf.mxu0
    %248 = vdwg.mxu0
    %249 = vmatpush.bf16.msra.mxu0 %v198
    %250 = vmatpush.bf16.msra.mxu0 %v195
    %251 = vmatpush.bf16.msra.mxu0 %v192
    %252 = vmatpush.bf16.msra.mxu0 %v189
    %253 = vmatpush.bf16.msra.mxu0 %v186
    %254 = vmatpush.bf16.msra.mxu0 %v183
    %255 = vmatpush.bf16.msra.mxu0 %v180
    %256 = vmatpush.bf16.msra.mxu0 %v177
    %257 = vmatmul.bf16.gmra.mxu0 %v62
    %v258 = vpop.f32.mrf.mxu0
    %v259 = vadd.f32 0.0, %v258
    %v260 = vpop.f32.mrf.mxu0
    %261 = vdwg.mxu0
    %v262 = vld [vmem:[#allocation7] sm:$0x7]
    %v263 = vadd.f32 %v233, 1.0
    %v264 = vperm.slane %v262, 0
    %v265 = vadd.f32 %v263, %v264
    %v266 = vadd.f32 %v246, 1.0
    %v267 = vmul.f32 %v265, %v266
    %v268 = vperm.slane %v262, 1
    %v269 = vadd.f32 %v267, %v268
    %v270 = vadd.f32 %v259, 1.0
    %v271 = vmul.f32 %v269, %v270
    %v272 = vperm.slane %v262, 2
    %v273 = vadd.f32 %v271, %v272
    %v274 = vmul.f32 %v61, %v273
    %v275 = vld [vmem:[%s3] sm:$0x1]
    %v277 = vperm.slane %v275, 0
    %v279 = vadd.f32 %v274, %v277
    %280 = vst [vmem:[#allocation8] sm:$0xf] %v279
    // Predicated region
    $region30: #{tpu_custom_call.1} parent=1 // pred_check
      _
    $region31: #{tpu_custom_call.1} parent=1 // pred_check_branch
      %282 = sbr.rel (0) target = $region33
    $region32: #{tpu_custom_call.1} parent=1 // pred_region
      %284 = vsyncadd [#allocation4], 0
      %s286 = sshll.u32 [#allocation8], 4
      %s287 = int_to_ptr.vmem [resolvable:$true] %s286
      %s288 = sshll.u32 %s4, 4
      %s289 = int_to_ptr.hbm [resolvable:$true] %s288
      %291 = dma.vmem_to_hbm [thread:$0]  %s287, 64, %s289, [#allocation4]
    $region33: #{tpu_custom_call.1} parent=1 // pred_fallthru
      _
    // Predicated region
    $region34: #{tpu_custom_call.1} parent=1 // pred_check
      _
    $region35: #{tpu_custom_call.1} parent=1 // pred_check_branch
      %293 = sbr.rel (0) target = $region37
    $region36: #{tpu_custom_call.1} parent=1 // pred_region
      %295 = dma.done [#allocation4], 64
    $region37: #{tpu_custom_call.1} parent=1 // pred_fallthru
      _
    %296 = vsyncpa [#allocation3], 1
    %297 = vsyncpa [#allocation6], 1
    %298 = vsyncpa [#allocation4], 1

</llo_original>
